<compile_context>
chip_gen: v7x
topology: tpu7x:2x2x1
jax: 0.10.0
libtpu: 0.0.40
codegen_flags: <defaults>
</compile_context>

<pallas_src>
import jax
import jax.numpy as jnp
from jax import lax
from jax.experimental import pallas as pl
from jax.experimental.pallas import tpu as pltpu

_TILE_THRESHOLD_BYTES = 2 * 1024 * 1024    # tile whenever x exceeds this
_X_TILE_BUDGET_BYTES = 12 * 1024 * 1024    # double-buffered x tile budget
_MAX_BLOCK_B = 8192                        # keep multiple grid steps for megacore


def _c1_kernel(x_ref, w_ref, b_ref, o_ref):
    """num_classes == 1 path: VPU multiply + lane reduce, no MXU.

    x_ref: (TB, D) VMEM   w_ref: (1, D) VMEM (native PyTorch row layout)
    b_ref: (1,)  SMEM     o_ref: (TB, 1) VMEM
    """
    x = x_ref[...].astype(jnp.float32)
    w = w_ref[...].astype(jnp.float32)
    z = jnp.sum(x * w, axis=-1, keepdims=True) + b_ref[0]
    # Dropout: identity at inference time.
    # TODO(synk): training-mode dropout (pltpu.prng_random_bits mask) not implemented.
    o_ref[...] = jax.nn.sigmoid(z).astype(o_ref.dtype)


def _dot_kernel(x_ref, w_ref, b_ref, o_ref):
    """General num_classes > 1 path (MXU); weight in native (C, D) layout.

    x_ref: (TB, D)   w_ref: (C, D)   b_ref: (1, C)   o_ref: (TB, C)
    """
    z = lax.dot_general(
        x_ref[...], w_ref[...],
        dimension_numbers=(((1,), (1,)), ((), ())),   # contract both on D
        preferred_element_type=jnp.float32,
    )
    z = z + b_ref[...].astype(jnp.float32)
    o_ref[...] = jax.nn.sigmoid(z).astype(o_ref.dtype)


def _pick_block_b(D, itemsize):
    """Rows per batch tile so the double-buffered x tile stays within budget."""
    rows = _X_TILE_BUDGET_BYTES // (2 * D * itemsize)   # 2 = double buffer
    rows = max(8, min(rows, _MAX_BLOCK_B))
    return (rows // 8) * 8                              # sublane alignment


def emotion_classifier_forward(seq_input, weight, bias, *, block_b=None):
    """seq_input: (..., D); weight: (C, D) (PyTorch layout); bias: (C,)."""
    orig_shape = seq_input.shape
    D = orig_shape[-1]
    C = weight.shape[0]
    x = seq_input.reshape(-1, D)
    B = x.shape[0]
    itemsize = x.dtype.itemsize
    x_bytes = B * D * itemsize

    if block_b is None:
        block_b = B if x_bytes <= _TILE_THRESHOLD_BYTES else _pick_block_b(D, itemsize)
    block_b = min(block_b, B)
    tiled = block_b < B
    if tiled and block_b % 8 != 0:
        block_b = max(8, (block_b // 8) * 8)

    vmem = pl.BlockSpec(memory_space=pltpu.MemorySpace.VMEM)
    smem = pl.BlockSpec(memory_space=pltpu.MemorySpace.SMEM)
    parallel_b = pltpu.CompilerParams(dimension_semantics=("parallel",))
    out_dtype = x.dtype

    if C == 1:
        bias_smem = bias.astype(jnp.float32)          # (1,) scalar word in SMEM
        if tiled:
            out = pl.pallas_call(
                _c1_kernel,
                out_shape=jax.ShapeDtypeStruct((B, 1), out_dtype),
                grid=(pl.cdiv(B, block_b),),
                in_specs=[
                    pl.BlockSpec((block_b, D), lambda i: (i, 0)),
                    pl.BlockSpec((1, D), lambda i: (0, 0)),      # weight resident
                    smem,
                ],
                out_specs=pl.BlockSpec((block_b, 1), lambda i: (i, 0)),
                compiler_params=parallel_b,
            )(x, weight, bias_smem)
        else:
            # Tiny-batch path: single ungridded invocation, whole arrays in
            # VMEM, no grid/pipeline scaffolding.
            out = pl.pallas_call(
                _c1_kernel,
                out_shape=jax.ShapeDtypeStruct((B, 1), out_dtype),
                in_specs=[vmem, vmem, smem],
                out_specs=vmem,
            )(x, weight, bias_smem)
    else:
        bias2d = bias.reshape(1, C)
        if tiled:
            out = pl.pallas_call(
                _dot_kernel,
                out_shape=jax.ShapeDtypeStruct((B, C), out_dtype),
                grid=(pl.cdiv(B, block_b),),
                in_specs=[
                    pl.BlockSpec((block_b, D), lambda i: (i, 0)),
                    pl.BlockSpec((C, D), lambda i: (0, 0)),      # weight resident
                    pl.BlockSpec((1, C), lambda i: (0, 0)),      # bias resident
                ],
                out_specs=pl.BlockSpec((block_b, C), lambda i: (i, 0)),
                compiler_params=parallel_b,
            )(x, weight, bias2d)
        else:
            out = pl.pallas_call(
                _dot_kernel,
                out_shape=jax.ShapeDtypeStruct((B, C), out_dtype),
                in_specs=[vmem, vmem, vmem],
                out_specs=vmem,
            )(x, weight, bias2d)

    return out.reshape(orig_shape[:-1] + (C,))


def _ref_forward(x, w, b):
    """Plain-JAX reference (dropout is identity at inference)."""
    z = lax.dot_general(x, w, (((x.ndim - 1,), (1,)), ((), ())),
                        precision=lax.Precision.HIGHEST)
    return jax.nn.sigmoid(z + b)


if __name__ == "__main__":
    key = jax.random.PRNGKey(0)
    k_x, k_w, k_b, k_x2, k_w2, k_b2 = jax.random.split(key, 6)

    # 1) Small case matching the module defaults (B=8, D=32, C=1):
    #    ungridded VPU-only path.
    batch, input_dims, num_classes = 8, 32, 1
    x = jax.random.normal(k_x, (batch, input_dims), dtype=jnp.float32)
    w = jax.random.normal(k_w, (num_classes, input_dims), dtype=jnp.float32) * 0.1
    b = jax.random.normal(k_b, (num_classes,), dtype=jnp.float32) * 0.1
    out = jax.block_until_ready(emotion_classifier_forward(x, w, b))
    assert out.shape == (batch, num_classes)
    assert jnp.allclose(out, _ref_forward(x, w, b), atol=1e-5, rtol=1e-5)

    # 2) Tiled C == 1 path with a ragged last tile (block_b forced small so the
    #    pipelined grid path is exercised at small shapes: 300 = 2*128 + 44).
    B2, D2 = 300, 128
    x2 = jax.random.normal(k_x2, (B2, D2), dtype=jnp.float32)
    w1 = jax.random.normal(k_w2, (1, D2), dtype=jnp.float32) * 0.05
    b1 = jax.random.normal(k_b2, (1,), dtype=jnp.float32) * 0.05
    out2 = jax.block_until_ready(emotion_classifier_forward(x2, w1, b1, block_b=128))
    assert out2.shape == (B2, 1)
    assert jnp.allclose(out2, _ref_forward(x2, w1, b1), atol=1e-5, rtol=1e-5)

    # 3) Tiled C > 1 (MXU) path, native (C, D) weight layout, ragged last tile.
    C3 = 4
    w3 = jax.random.normal(k_w2, (C3, D2), dtype=jnp.float32) * 0.05
    b3 = jax.random.normal(k_b2, (C3,), dtype=jnp.float32) * 0.05
    out3 = jax.block_until_ready(emotion_classifier_forward(x2, w3, b3, block_b=128))
    assert out3.shape == (B2, C3)
    assert jnp.allclose(out3, _ref_forward(x2, w3, b3), atol=1e-4, rtol=1e-4)

    print("KERNEL_OK")
</pallas_src>

<mosaic_0001>
module attributes {stable_mosaic.version = 11 : i64} {
  func.func @_c1_kernel(%arg0: memref<8x32xf32, #tpu.memory_space<vmem>>, %arg1: memref<1x32xf32, #tpu.memory_space<vmem>>, %arg2: memref<1xf32, #tpu.memory_space<smem>>, %arg3: memref<8x1xf32, #tpu.memory_space<vmem>>) attributes {dimension_semantics = [], scalar_prefetch = 0 : i64, scratch_operands = 0 : i64, tpu.core_type = #tpu.core_type<tc>} {
    %c0 = arith.constant 0 : index
    %c0_0 = arith.constant 0 : index
    %0 = vector.load %arg0[%c0, %c0_0] : memref<8x32xf32, #tpu.memory_space<vmem>>, vector<8x32xf32>
    %c0_1 = arith.constant 0 : index
    %c0_2 = arith.constant 0 : index
    %1 = vector.load %arg1[%c0_1, %c0_2] : memref<1x32xf32, #tpu.memory_space<vmem>>, vector<1x32xf32>
    %2 = vector.broadcast %1 : vector<1x32xf32> to vector<8x32xf32>
    %3 = arith.mulf %0, %2 : vector<8x32xf32>
    %cst = arith.constant dense<0.000000e+00> : vector<8xf32>
    %4 = vector.multi_reduction <add>, %3, %cst [1] : vector<8x32xf32> to vector<8xf32>
    %5 = vector.shape_cast %4 : vector<8xf32> to vector<8x1xf32>
    %c0_3 = arith.constant 0 : index
    %6 = memref.load %arg2[%c0_3] : memref<1xf32, #tpu.memory_space<smem>>
    %7 = vector.broadcast %6 : f32 to vector<8x1xf32>
    %8 = arith.addf %5, %7 : vector<8x1xf32>
    %9 = arith.negf %8 : vector<8x1xf32>
    %10 = math.exp %9 : vector<8x1xf32>
    %cst_4 = arith.constant 1.000000e+00 : f32
    %11 = vector.broadcast %cst_4 : f32 to vector<8x1xf32>
    %12 = arith.addf %11, %10 : vector<8x1xf32>
    %13 = arith.divf %11, %12 : vector<8x1xf32>
    %c0_5 = arith.constant 0 : index
    %c0_6 = arith.constant 0 : index
    %14 = vector.load %arg3[%c0_5, %c0_6] : memref<8x1xf32, #tpu.memory_space<vmem>>, vector<8x1xf32>
    tpu.vector_store %arg3[%c0_5, %c0_6], %13 {strides = array<i32>} : memref<8x1xf32, #tpu.memory_space<vmem>>, vector<8x1xf32>,
    return
  }
}

</mosaic_0001>

<llo_original>
// kernel: tpu_custom_call.1
$region0: #{tpu_custom_call.1}
  #allocation0 [shape = 'u32[]', space=smem, size = 0x4, offset = 0x4, fixed_abs, tag = 'smem constant byte address 0x4 - core index']
  #allocation1 [shape = 'u32[144,128]{1,0:T(1,128)}', space=vmem, size = 0x12000, scoped, tag = 'internal scratch']
  #allocation2 [shape = 'f32[1]{0:T(128)S(6)}', space=smem, size = 0x200, scoped, tag = 'scoped memory for tpu_custom_call.1']
  %s0 = inlined_call_operand.hbm [shape: f32[8,32], index: 0, kind: input, shape index: {}]
  %s1 = inlined_call_operand.vmem [shape: f32[1,32], index: 1, kind: input, shape index: {}]
  %s2 = inlined_call_operand.<no memory space> [shape: f32[1], index: 2, kind: input, shape index: {}]
  %s3 = inlined_call_operand.vmem [shape: f32[8,1], index: 3, kind: output, shape index: {}]
  %s4 = sld [smem:[#allocation0]]
  $region26: #{tpu_custom_call.1} parent=0
    _
  %s6 = ssub.s32 1, %s4
  %s7 = scalar_select 0, %s6, %s4
  %8 = sst [smem:[#allocation2]] %s2
  $region1: #{tpu_custom_call.1} parent=0
    #allocation3 [shape = 'u8[4096]{0}', space=vmem, size = 0x1000, scoped, tag = 'input window, operand 0, single buffered']
    #allocation4 [shape = 's32[1]{0}', space=sflag, size = 0x4, scoped, tag = 'scoped memory for tpu_custom_call.1']
    %9 = vsyncpa [#allocation4], 0
    // Predicated region
    $region2: #{tpu_custom_call.1} parent=1 // pred_check
      _
    $region3: #{tpu_custom_call.1} parent=1 // pred_check_branch
      %11 = sbr.rel (0) target = $region5
    $region4: #{tpu_custom_call.1} parent=1 // pred_region
      %s13 = ssub.s32 128, 128
      %14 = vsyncadd [#allocation4], %s13
      %s16 = sshll.u32 [#allocation3], 4
      %s17 = int_to_ptr.vmem [resolvable:$true] %s16
      %19 = dma.hbm_to_vmem [thread:$0]  %s0, 128, %s17, [#allocation4]
    $region5: #{tpu_custom_call.1} parent=1 // pred_fallthru
      _
    // Predicated region
    $region6: #{tpu_custom_call.1} parent=1 // pred_check
      _
    $region7: #{tpu_custom_call.1} parent=1 // pred_check_branch
      %21 = sbr.rel (0) target = $region9
    $region8: #{tpu_custom_call.1} parent=1 // pred_region
      _
    $region9: #{tpu_custom_call.1} parent=1 // pred_fallthru
      _
    // Predicated region
    $region10: #{tpu_custom_call.1} parent=1 // pred_check
      _
    $region11: #{tpu_custom_call.1} parent=1 // pred_check_branch
      %23 = sbr.rel (0) target = $region13
    $region12: #{tpu_custom_call.1} parent=1 // pred_region
      _
    $region13: #{tpu_custom_call.1} parent=1 // pred_fallthru
      _
    // Predicated region
    $region14: #{tpu_custom_call.1} parent=1 // pred_check
      _
    $region15: #{tpu_custom_call.1} parent=1 // pred_check_branch
      %25 = sbr.rel (0) target = $region17
    $region16: #{tpu_custom_call.1} parent=1 // pred_region
      %26 = dma.done [#allocation4], 128
    $region17: #{tpu_custom_call.1} parent=1 // pred_fallthru
      _
    %v27 = vld [vmem:[#allocation3] sm:$0xff]
    %v28 = vld [vmem:[%s1] sm:$0x1]
    %v30 = vlaneseq
    %v31 = vshrl.u32 %v30, 7
    %v32 = vsub.s32 0, %v31
    %v33 = vrot.slane %v28, %v32
    %v35 = vmul.f32 %v27, %v33
    %vm36 = vcmask 261120
    %v37 = vsel %vm36, %v35, 0.0
    %38 = vadd.xlane.f32.xlu0 %v37
    %v39 = vpop.xlane.xlu0 %38
    %s40 = sld [smem:[#allocation2]]
    %v41 = vstv %s40
    %v42 = vadd.f32 %v39, %v41
    %v43 = vxor.u32 %v42, 2147483648
    %v44 = vmul.f32 %v43, 1.442695
    %v45 = vpow.pop %v44
    %v46 = vadd.f32 %v45, 1.0
    %v47 = vrcp.pop %v46
    %v48 = vmul.f32 1.0, %v47
    %vm49 = vcmask 7168
    %50 = vst.msk [vmem:[%s3] sm:$0xff] %vm49, %v48
    // Predicated region
    $region18: #{tpu_custom_call.1} parent=1 // pred_check
      _
    $region19: #{tpu_custom_call.1} parent=1 // pred_check_branch
      %52 = sbr.rel (0) target = $region21
    $region20: #{tpu_custom_call.1} parent=1 // pred_region
      _
    $region21: #{tpu_custom_call.1} parent=1 // pred_fallthru
      _
    // Predicated region
    $region22: #{tpu_custom_call.1} parent=1 // pred_check
      _
    $region23: #{tpu_custom_call.1} parent=1 // pred_check_branch
      %54 = sbr.rel (0) target = $region25
    $region24: #{tpu_custom_call.1} parent=1 // pred_region
      _
    $region25: #{tpu_custom_call.1} parent=1 // pred_fallthru
      _
    %55 = vsyncpa [#allocation4], 1

</llo_original>
